<compile_context>
chip_gen: v6e
topology: v6e:2x2x1
jax: 0.10.0
libtpu: 0.0.40
codegen_flags: <defaults>
</compile_context>

<pallas_src>
import functools

import jax
import jax.numpy as jnp
from jax.experimental import pallas as pl
from jax.experimental.pallas import tpu as pltpu


def _combined_loss_kernel(pred_ref, targ_ref, out_ref, acc_bce_ref, acc_kl_ref, *,
                          weight_softmax, n_rows, tm, nbc, nb_total,
                          needs_row_mask, has_clamped_blocks, binary_targets):
    c = pl.program_id(0)   # core / row-range shard
    i = pl.program_id(1)   # row block within this shard

    @pl.when(i == 0)
    def _():
        acc_bce_ref[...] = jnp.zeros_like(acc_bce_ref)
        acc_kl_ref[...] = jnp.zeros_like(acc_kl_ref)

    def compute():
        pred = pred_ref[...].astype(jnp.float32)   # (tm, C)
        targ = targ_ref[...].astype(jnp.float32)   # (tm, C)
        C = pred.shape[1]

        # ---- row-local softmax statistics (log_p is never materialized) ----
        m = jnp.max(pred, axis=1, keepdims=True)                        # (tm, 1)
        z = pred - m                                                    # (tm, C)
        lse = jnp.log(jnp.sum(jnp.exp(z), axis=1, keepdims=True))       # (tm, 1)

        # ---- KL(tar || softmax(pred)) per row, tar = targ / rowsum ----
        # kl = (sum targ*log targ - sum targ*z + lse*rowsum
        #       - log(rowsum)*rowsum) / rowsum        (rowsum==0 -> 1e-6)
        row_sum = jnp.sum(targ, axis=1, keepdims=True)                  # (tm, 1)
        safe_sum = jnp.where(row_sum == 0.0, 1e-6, row_sum)
        t_z = jnp.sum(targ * z, axis=1, keepdims=True)                  # (tm, 1)
        if binary_targets:
            # targ in {0,1}  =>  targ * log(targ) == 0 elementwise.
            t_logt = 0.0
        else:
            log_targ = jnp.log(jnp.where(targ == 0.0, 1.0, targ))
            t_logt = jnp.sum(targ * log_targ, axis=1, keepdims=True)    # (tm, 1)
        s = t_logt - t_z + lse * row_sum                                # (tm, 1)
        kl_rows = (s - jnp.log(safe_sum) * row_sum) / safe_sum          # (tm, 1)

        # ---- binary_cross_entropy_with_logits, elementwise (stable form) ----
        bce = (jnp.maximum(pred, 0.0) - pred * targ
               + jnp.log1p(jnp.exp(-jnp.abs(pred))))                    # (tm, C)

        if needs_row_mask:
            # Zero only the OUTPUT contributions of rows beyond N; any garbage
            # in those HBM tail rows is row-local and selected away here.
            blk = c * nbc + i
            local = jax.lax.broadcasted_iota(jnp.int32, (tm, 1), 0)
            valid = (blk * tm + local) < n_rows                         # (tm, 1)
            bce = jnp.where(valid, bce, 0.0)
            kl_rows = jnp.where(valid, kl_rows, 0.0)

        # ---- lane/sublane-preserving partial sums (VPU adds across vregs) ----
        acc_bce_ref[...] += jnp.sum(bce.reshape(tm // 8, 8, C), axis=0)      # (8, C)
        acc_kl_ref[...] += jnp.sum(kl_rows.reshape(tm // 8, 8, 1), axis=0)   # (8, 1)

    if has_clamped_blocks:
        # Blocks past nb_total are clamped duplicates of the last block:
        # skip their compute entirely (their DMA is the only residual cost).
        pl.when(c * nbc + i < nb_total)(compute)
    else:
        compute()

    # ---- epilogue: single full reduction + per-core partial writeback ----
    @pl.when(i == pl.num_programs(1) - 1)
    def _():
        part = (weight_softmax * jnp.sum(acc_kl_ref[...])
                + jnp.sum(acc_bce_ref[...]))
        # Lane-dense write of the partial (wrapper reads [c, 0, 0]).
        out_ref[...] = jnp.full((1, 8, 128), part, dtype=jnp.float32)


def _tensorcores_per_chip():
    """TensorCores behind one JAX device: 1 on v5e/v6e, 2 on v4/v5p/v7x."""
    try:
        kind = jax.devices()[0].device_kind.lower()
    except Exception:
        return 1
    if "lite" in kind or "v5e" in kind or "v6" in kind:
        return 1
    if "v4" in kind or "v5" in kind or "v7" in kind or "7x" in kind:
        return 2
    return 1


def combined_loss(pred_score, target_score, weight_softmax, *,
                  binary_targets=False, tm=None, tile_bytes=4 << 20,
                  num_cores=None):
    """Pallas forward of CombinedLoss. Returns a scalar f32.

    binary_targets=True is a fast path valid when every target is 0 or 1
    (skips the log(targ) transcendental); it does not change the result.
    """
    N, C = pred_score.shape
    assert target_score.shape == (N, C)

    if num_cores is None:
        num_cores = _tensorcores_per_chip()
    num_cores = max(1, int(num_cores))

    # Row tile: largest multiple of 8 whose (tm, C) f32 block fits the per-buffer
    # byte budget. All reductions are over the class axis, so C stays whole.
    if tm is None:
        tm = (tile_bytes // (C * 4)) // 8 * 8
        tm = max(8, tm)
    else:
        tm = max(8, (tm // 8) * 8)
    # No point tiling beyond the (sublane-rounded) batch size.
    tm = min(tm, max(8, ((N + 7) // 8) * 8))

    nb_total = -(-N // tm)                        # cdiv: row blocks covering N
    num_cores = min(num_cores, nb_total)          # never more cores than blocks
    nbc = -(-nb_total // num_cores)               # row blocks per core
    needs_row_mask = (N % tm) != 0                # partial tail block exists
    has_clamped = (num_cores * nbc) != nb_total   # some cores get duplicate blocks

    if has_clamped:
        def in_map(c, i):
            # Clamp fully-out-of-range logical blocks; their compute is skipped.
            return (jnp.minimum(c * nbc + i, nb_total - 1), 0)
    else:
        def in_map(c, i):
            return (c * nbc + i, 0)

    # 2 inputs x 2 pipeline buffers x block, plus accumulators / headroom.
    block_bytes = tm * C * 4
    vmem_limit = int(min(64 * 1024 * 1024,
                         max(32 * 1024 * 1024, 5 * block_bytes + (1 << 20))))

    kernel = functools.partial(
        _combined_loss_kernel,
        weight_softmax=float(weight_softmax),
        n_rows=N, tm=tm, nbc=nbc, nb_total=nb_total,
        needs_row_mask=needs_row_mask,
        has_clamped_blocks=has_clamped,
        binary_targets=bool(binary_targets))

    partials = pl.pallas_call(
        kernel,
        out_shape=jax.ShapeDtypeStruct((num_cores, 8, 128), jnp.float32),
        grid_spec=pltpu.PrefetchScalarGridSpec(
            num_scalar_prefetch=0,
            grid=(num_cores, nbc),
            in_specs=[
                pl.BlockSpec((tm, C), in_map),
                pl.BlockSpec((tm, C), in_map),
            ],
            out_specs=pl.BlockSpec((1, 8, 128), lambda c, i: (c, 0, 0)),
            scratch_shapes=[
                pltpu.VMEM((8, C), jnp.float32),   # BCE accumulator (lane-preserving)
                pltpu.VMEM((8, 1), jnp.float32),   # KL per-row accumulator
            ],
        ),
        compiler_params=pltpu.CompilerParams(
            dimension_semantics=("parallel", "arbitrary"),
            vmem_limit_bytes=vmem_limit,
        ),
    )(pred_score, target_score)

    # loss = (weight_softmax * kl_sum + bce_sum) / N
    return jnp.sum(partials[:, 0, 0]) / N


def _reference_loss(pred, targ, weight_softmax):
    pred = pred.astype(jnp.float32)
    targ = targ.astype(jnp.float32)
    N, C = pred.shape
    tar_sum = jnp.sum(targ, axis=1, keepdims=True)
    tar_sum = jnp.where(tar_sum == 0.0, 1e-6, tar_sum)
    tar = targ / tar_sum
    log_p = jax.nn.log_softmax(pred, axis=1)
    log_tar = jnp.log(jnp.where(tar == 0.0, 1.0, tar))
    loss1 = jnp.sum(tar * (log_tar - log_p)) / N
    bce = jnp.maximum(pred, 0.0) - pred * targ + jnp.log1p(jnp.exp(-jnp.abs(pred)))
    loss2 = jnp.mean(bce) * C
    return weight_softmax * loss1 + loss2


if __name__ == "__main__":
    # TODO(synk): ragged C (not a multiple of 128) relies on Mosaic masking the
    # lane padding of axis-1 reductions; tests below keep C at 128-multiples.
    weight_softmax = 0.5  # module __init__ constant
    key = jax.random.PRNGKey(0)
    k1, k2, k3, k4, k5, k6 = jax.random.split(key, 6)

    # Case 1: N=16, C=128 — default tile / auto core count, SOFT targets, with an
    # all-zero target row to exercise the tar_sum == 0 -> 1e-6 path.
    N1, C1 = 16, 128
    pred1 = jax.random.normal(k1, (N1, C1), dtype=jnp.float32)
    targ1 = jax.random.uniform(k2, (N1, C1), dtype=jnp.float32)
    targ1 = targ1 * (targ1 > 0.7)            # soft, sparse, non-binary values
    targ1 = targ1.at[0, :].set(0.0)
    out1 = jax.block_until_ready(combined_loss(pred1, targ1, weight_softmax))
    ref1 = _reference_loss(pred1, targ1, weight_softmax)
    assert jnp.allclose(out1, ref1, rtol=1e-5, atol=1e-5), (out1, ref1)

    # Case 2: ragged batch (N not a multiple of the tile), forced 2-core split
    # with an uneven block count -> exercises the clamped-duplicate-block skip,
    # the masked tail tile, and the binary-targets fast path.
    N2, C2 = 36, 256
    pred2 = jax.random.normal(k3, (N2, C2), dtype=jnp.float32)
    targ2 = (jax.random.uniform(k4, (N2, C2)) > 0.8).astype(jnp.float32)
    out2 = jax.block_until_ready(
        combined_loss(pred2, targ2, weight_softmax, tm=8, num_cores=2,
                      binary_targets=True))
    ref2 = _reference_loss(pred2, targ2, weight_softmax)
    assert jnp.allclose(out2, ref2, rtol=1e-5, atol=1e-5), (out2, ref2)

    # Case 3: multi-step accumulation on one core with a masked tail block and
    # the general (non-binary) KL path.
    N3, C3 = 40, 128
    pred3 = jax.random.normal(k5, (N3, C3), dtype=jnp.float32)
    targ3 = jax.random.uniform(k6, (N3, C3), dtype=jnp.float32)
    targ3 = targ3 * (targ3 > 0.5)
    out3 = jax.block_until_ready(
        combined_loss(pred3, targ3, weight_softmax, tm=16, num_cores=1))
    ref3 = _reference_loss(pred3, targ3, weight_softmax)
    assert jnp.allclose(out3, ref3, rtol=1e-5, atol=1e-5), (out3, ref3)

    print("KERNEL_OK")
</pallas_src>

<mosaic_0001>
module attributes {stable_mosaic.version = 11 : i64} {
  func.func @_combined_loss_kernel(%arg0: i32, %arg1: i32, %arg2: memref<16x128xf32, #tpu.memory_space<vmem>>, %arg3: memref<16x128xf32, #tpu.memory_space<vmem>>, %arg4: memref<1x8x128xf32, #tpu.memory_space<vmem>>, %arg5: memref<8x128xf32, #tpu.memory_space<vmem>>, %arg6: memref<8x1xf32, #tpu.memory_space<vmem>>) attributes {dimension_semantics = [#tpu.dimension_semantics<parallel>, #tpu.dimension_semantics<arbitrary>], iteration_bounds = array<i64: 1, 1>, scalar_prefetch = 0 : i64, scratch_operands = 2 : i64, tpu.core_type = #tpu.core_type<tc>, window_params = [{transform_indices = @transform_0, window_bounds = array<i64: 16, 128>}, {transform_indices = @transform_1, window_bounds = array<i64: 16, 128>}, {transform_indices = @transform_2, window_bounds = array<i64: 1, 8, 128>}]} {
    %c0_i32 = arith.constant 0 : i32
    %0 = arith.cmpi eq, %arg1, %c0_i32 : i32
    %1 = arith.extui %0 : i1 to i32
    %c0_i32_0 = arith.constant 0 : i32
    %2 = arith.cmpi ne, %1, %c0_i32_0 : i32
    scf.if %2 {
      %cst_26 = arith.constant 0.000000e+00 : f32
      %60 = vector.broadcast %cst_26 : f32 to vector<8x128xf32>
      %c0_27 = arith.constant 0 : index
      %c0_28 = arith.constant 0 : index
      %61 = vector.load %arg5[%c0_27, %c0_28] : memref<8x128xf32, #tpu.memory_space<vmem>>, vector<8x128xf32>
      tpu.vector_store %arg5[%c0_27, %c0_28], %60 {strides = array<i32>} : memref<8x128xf32, #tpu.memory_space<vmem>>, vector<8x128xf32>,
      %cst_29 = arith.constant 0.000000e+00 : f32
      %62 = vector.broadcast %cst_29 : f32 to vector<8x1xf32>
      %c0_30 = arith.constant 0 : index
      %c0_31 = arith.constant 0 : index
      %63 = vector.load %arg6[%c0_30, %c0_31] : memref<8x1xf32, #tpu.memory_space<vmem>>, vector<8x1xf32>
      tpu.vector_store %arg6[%c0_30, %c0_31], %62 {strides = array<i32>} : memref<8x1xf32, #tpu.memory_space<vmem>>, vector<8x1xf32>,
    } else {
    }
    %c0 = arith.constant 0 : index
    %c0_1 = arith.constant 0 : index
    %3 = vector.load %arg2[%c0, %c0_1] : memref<16x128xf32, #tpu.memory_space<vmem>>, vector<16x128xf32>
    %c0_2 = arith.constant 0 : index
    %c0_3 = arith.constant 0 : index
    %4 = vector.load %arg3[%c0_2, %c0_3] : memref<16x128xf32, #tpu.memory_space<vmem>>, vector<16x128xf32>
    %cst = arith.constant dense<0xFF800000> : vector<16xf32>
    %5 = vector.multi_reduction <maximumf>, %3, %cst [1] : vector<16x128xf32> to vector<16xf32>
    %6 = vector.shape_cast %5 : vector<16xf32> to vector<16x1xf32>
    %7 = vector.broadcast %6 : vector<16x1xf32> to vector<16x128xf32>
    %8 = arith.subf %3, %7 : vector<16x128xf32>
    %9 = math.exp %8 : vector<16x128xf32>
    %cst_4 = arith.constant dense<0.000000e+00> : vector<16xf32>
    %10 = vector.multi_reduction <add>, %9, %cst_4 [1] : vector<16x128xf32> to vector<16xf32>
    %11 = vector.shape_cast %10 : vector<16xf32> to vector<16x1xf32>
    %12 = math.log %11 : vector<16x1xf32>
    %cst_5 = arith.constant dense<0.000000e+00> : vector<16xf32>
    %13 = vector.multi_reduction <add>, %4, %cst_5 [1] : vector<16x128xf32> to vector<16xf32>
    %14 = vector.shape_cast %13 : vector<16xf32> to vector<16x1xf32>
    %cst_6 = arith.constant 0.000000e+00 : f32
    %15 = vector.broadcast %cst_6 : f32 to vector<16x1xf32>
    %16 = arith.cmpf oeq, %14, %15 : vector<16x1xf32>
    %cst_7 = arith.constant 9.99999997E-7 : f32
    %17 = vector.broadcast %cst_7 : f32 to vector<16x1xf32>
    %18 = arith.select %16, %17, %14 : vector<16x1xi1>, vector<16x1xf32>
    %19 = arith.mulf %4, %8 : vector<16x128xf32>
    %cst_8 = arith.constant dense<0.000000e+00> : vector<16xf32>
    %20 = vector.multi_reduction <add>, %19, %cst_8 [1] : vector<16x128xf32> to vector<16xf32>
    %21 = vector.shape_cast %20 : vector<16xf32> to vector<16x1xf32>
    %cst_9 = arith.constant 0.000000e+00 : f32
    %22 = vector.broadcast %cst_9 : f32 to vector<16x128xf32>
    %23 = arith.cmpf oeq, %4, %22 : vector<16x128xf32>
    %cst_10 = arith.constant 1.000000e+00 : f32
    %24 = vector.broadcast %cst_10 : f32 to vector<16x128xf32>
    %25 = arith.select %23, %24, %4 : vector<16x128xi1>, vector<16x128xf32>
    %26 = math.log %25 : vector<16x128xf32>
    %27 = arith.mulf %4, %26 : vector<16x128xf32>
    %cst_11 = arith.constant dense<0.000000e+00> : vector<16xf32>
    %28 = vector.multi_reduction <add>, %27, %cst_11 [1] : vector<16x128xf32> to vector<16xf32>
    %29 = vector.shape_cast %28 : vector<16xf32> to vector<16x1xf32>
    %30 = arith.subf %29, %21 : vector<16x1xf32>
    %31 = arith.mulf %12, %14 : vector<16x1xf32>
    %32 = arith.addf %30, %31 : vector<16x1xf32>
    %33 = math.log %18 : vector<16x1xf32>
    %34 = arith.mulf %33, %14 : vector<16x1xf32>
    %35 = arith.subf %32, %34 : vector<16x1xf32>
    %36 = arith.divf %35, %18 : vector<16x1xf32>
    %cst_12 = arith.constant 0.000000e+00 : f32
    %37 = vector.broadcast %cst_12 : f32 to vector<16x128xf32>
    %38 = arith.maximumf %3, %37 : vector<16x128xf32>
    %39 = arith.mulf %3, %4 : vector<16x128xf32>
    %40 = arith.subf %38, %39 : vector<16x128xf32>
    %41 = math.absf %3 : vector<16x128xf32>
    %cst_13 = arith.constant 0.000000e+00 : f32
    %42 = vector.broadcast %cst_13 : f32 to vector<16x128xf32>
    %43 = arith.subf %42, %41 : vector<16x128xf32>
    %44 = math.exp %43 : vector<16x128xf32>
    %45 = math.log1p %44 : vector<16x128xf32>
    %46 = arith.addf %40, %45 : vector<16x128xf32>
    %c0_14 = arith.constant 0 : index
    %c0_15 = arith.constant 0 : index
    %47 = vector.load %arg5[%c0_14, %c0_15] : memref<8x128xf32, #tpu.memory_space<vmem>>, vector<8x128xf32>
    %48 = vector.shape_cast %46 : vector<16x128xf32> to vector<2x8x128xf32>
    %cst_16 = arith.constant dense<0.000000e+00> : vector<8x128xf32>
    %49 = vector.multi_reduction <add>, %48, %cst_16 [0] : vector<2x8x128xf32> to vector<8x128xf32>
    %50 = arith.addf %47, %49 : vector<8x128xf32>
    %c0_17 = arith.constant 0 : index
    %c0_18 = arith.constant 0 : index
    %51 = vector.load %arg5[%c0_17, %c0_18] : memref<8x128xf32, #tpu.memory_space<vmem>>, vector<8x128xf32>
    tpu.vector_store %arg5[%c0_17, %c0_18], %50 {strides = array<i32>} : memref<8x128xf32, #tpu.memory_space<vmem>>, vector<8x128xf32>,
    %c0_19 = arith.constant 0 : index
    %c0_20 = arith.constant 0 : index
    %52 = vector.load %arg6[%c0_19, %c0_20] : memref<8x1xf32, #tpu.memory_space<vmem>>, vector<8x1xf32>
    %53 = vector.shape_cast %36 : vector<16x1xf32> to vector<2x8x1xf32>
    %cst_21 = arith.constant dense<0.000000e+00> : vector<8x1xf32>
    %54 = vector.multi_reduction <add>, %53, %cst_21 [0] : vector<2x8x1xf32> to vector<8x1xf32>
    %55 = arith.addf %52, %54 : vector<8x1xf32>
    %c0_22 = arith.constant 0 : index
    %c0_23 = arith.constant 0 : index
    %56 = vector.load %arg6[%c0_22, %c0_23] : memref<8x1xf32, #tpu.memory_space<vmem>>, vector<8x1xf32>
    tpu.vector_store %arg6[%c0_22, %c0_23], %55 {strides = array<i32>} : memref<8x1xf32, #tpu.memory_space<vmem>>, vector<8x1xf32>,
    %c0_i32_24 = arith.constant 0 : i32
    %57 = arith.cmpi eq, %arg1, %c0_i32_24 : i32
    %58 = arith.extui %57 : i1 to i32
    %c0_i32_25 = arith.constant 0 : i32
    %59 = arith.cmpi ne, %58, %c0_i32_25 : i32
    scf.if %59 {
      %c0_26 = arith.constant 0 : index
      %c0_27 = arith.constant 0 : index
      %60 = vector.load %arg6[%c0_26, %c0_27] : memref<8x1xf32, #tpu.memory_space<vmem>>, vector<8x1xf32>
      %61 = vector.shape_cast %60 : vector<8x1xf32> to vector<1x8x1xf32>
      %cst_28 = arith.constant dense<0.000000e+00> : vector<1xf32>
      %62 = vector.multi_reduction <add>, %61, %cst_28 [1, 2] : vector<1x8x1xf32> to vector<1xf32>
      %63 = vector.shape_cast %62 : vector<1xf32> to vector<1x1x1xf32>
      %64 = vector.extract %63[0, 0, 0] : f32 from vector<1x1x1xf32>
      %cst_29 = arith.constant 5.000000e-01 : f32
      %65 = arith.mulf %cst_29, %64 : f32
      %c0_30 = arith.constant 0 : index
      %c0_31 = arith.constant 0 : index
      %66 = vector.load %arg5[%c0_30, %c0_31] : memref<8x128xf32, #tpu.memory_space<vmem>>, vector<8x128xf32>
      %67 = vector.shape_cast %66 : vector<8x128xf32> to vector<1x8x128xf32>
      %cst_32 = arith.constant dense<0.000000e+00> : vector<1xf32>
      %68 = vector.multi_reduction <add>, %67, %cst_32 [1, 2] : vector<1x8x128xf32> to vector<1xf32>
      %69 = vector.shape_cast %68 : vector<1xf32> to vector<1x1x1xf32>
      %70 = vector.extract %69[0, 0, 0] : f32 from vector<1x1x1xf32>
      %71 = arith.addf %65, %70 : f32
      %72 = vector.broadcast %71 : f32 to vector<1x8x128xf32>
      %c0_33 = arith.constant 0 : index
      %c0_34 = arith.constant 0 : index
      %c0_35 = arith.constant 0 : index
      %73 = vector.load %arg4[%c0_33, %c0_34, %c0_35] : memref<1x8x128xf32, #tpu.memory_space<vmem>>, vector<1x8x128xf32>
      tpu.vector_store %arg4[%c0_33, %c0_34, %c0_35], %72 {strides = array<i32>} : memref<1x8x128xf32, #tpu.memory_space<vmem>>, vector<1x8x128xf32>,
    } else {
    }
    return
  }
  func.func @transform_0(%arg0: i32, %arg1: i32) -> (i32, i32) {
    %c1_i32 = arith.constant 1 : i32
    %0 = arith.muli %arg0, %c1_i32 : i32
    %1 = arith.addi %0, %arg1 : i32
    %c0_i32 = arith.constant 0 : i32
    %c0_i32_0 = arith.constant 0 : i32
    return %1, %c0_i32 : i32, i32
  }
  func.func @transform_1(%arg0: i32, %arg1: i32) -> (i32, i32) {
    %c1_i32 = arith.constant 1 : i32
    %0 = arith.muli %arg0, %c1_i32 : i32
    %1 = arith.addi %0, %arg1 : i32
    %c0_i32 = arith.constant 0 : i32
    %c0_i32_0 = arith.constant 0 : i32
    return %1, %c0_i32 : i32, i32
  }
  func.func @transform_2(%arg0: i32, %arg1: i32) -> (i32, i32, i32) {
    %c0_i32 = arith.constant 0 : i32
    %c0_i32_0 = arith.constant 0 : i32
    %c0_i32_1 = arith.constant 0 : i32
    return %arg0, %c0_i32, %c0_i32_0 : i32, i32, i32
  }
}

</mosaic_0001>

<llo_original>
// kernel: tpu_custom_call.1
$region0: #{tpu_custom_call.1}
  #allocation0 [shape = 'u32[]', space=smem, size = 0x4, offset = 0x4, fixed_abs, tag = 'smem constant byte address 0x4 - core index']
  #allocation1 [shape = 'u32[144,128]{1,0:T(1,128)}', space=vmem, size = 0x12000, scoped, tag = 'internal scratch']
  #allocation2 [shape = 'f32[8,128]{1,0:T(8,128)}', space=vmem, size = 0x1000, scoped, tag = 'scratch operand']
  #allocation3 [shape = 'f32[8,1]{1,0:T(8,128)}', space=vmem, size = 0x1000, scoped, tag = 'scratch operand']
  %s0 = inlined_call_operand.hbm [shape: f32[16,128], index: 0, kind: input, shape index: {}]
  %s1 = inlined_call_operand.hbm [shape: f32[16,128], index: 1, kind: input, shape index: {}]
  %s2 = inlined_call_operand.hbm [shape: f32[1,8,128], index: 2, kind: output, shape index: {}]
  %s3 = sld [smem:[#allocation0]]
  $region34: #{tpu_custom_call.1} parent=0
    _
  %s5 = ssub.s32 1, %s3
  %s6 = scalar_select 0, %s5, %s3
  $region1: #{tpu_custom_call.1} parent=0
    #allocation4 [shape = 'u8[8192]{0}', space=vmem, size = 0x2000, scoped, tag = 'input window, operand 0, single buffered']
    #allocation5 [shape = 's32[1]{0}', space=sflag, size = 0x4, scoped, tag = 'scoped memory for tpu_custom_call.1']
    #allocation6 [shape = 's32[1]{0}', space=sflag, size = 0x4, scoped, tag = 'scoped memory for tpu_custom_call.1']
    #allocation7 [shape = 'u8[8192]{0}', space=vmem, size = 0x2000, scoped, tag = 'input window, operand 1, single buffered']
    #allocation8 [shape = 's32[1]{0}', space=sflag, size = 0x4, scoped, tag = 'scoped memory for tpu_custom_call.1']
    #allocation9 [shape = 'u8[4096]{0}', space=vmem, size = 0x1000, scoped, tag = 'output window, operand 0, single buffered']
    %7 = vsyncpa [#allocation5], 0
    %8 = vsyncpa [#allocation8], 0
    %9 = vsyncpa [#allocation6], 0
    // Predicated region
    $region2: #{tpu_custom_call.1} parent=1 // pred_check
      _
    $region3: #{tpu_custom_call.1} parent=1 // pred_check_branch
      %11 = sbr.rel (0) target = $region5
    $region4: #{tpu_custom_call.1} parent=1 // pred_region
      %s12 = sadd.s32 0, 0
      %s13 = smul.u32 2, %s12
      %s15 = ssub.s32 256, 256
      %16 = vsyncadd [#allocation5], %s15
      %s17 = smul.addr %s13, 128
      %s18 = scalar_lea.hbm %s0, %s17
      %s19 = sshll.u32 [#allocation4], 4
      %s20 = int_to_ptr.vmem [resolvable:$true] %s19
      %25 = dma.hbm_to_vmem [thread:$0]  %s18, 256, %s20, [#allocation5], 128, 128, 8
    $region5: #{tpu_custom_call.1} parent=1 // pred_fallthru
      _
    // Predicated region
    $region6: #{tpu_custom_call.1} parent=1 // pred_check
      _
    $region7: #{tpu_custom_call.1} parent=1 // pred_check_branch
      %27 = sbr.rel (0) target = $region9
    $region8: #{tpu_custom_call.1} parent=1 // pred_region
      %s28 = sadd.s32 0, 0
      %s29 = smul.u32 2, %s28
      %s31 = ssub.s32 256, 256
      %32 = vsyncadd [#allocation8], %s31
      %s33 = smul.addr %s29, 128
      %s34 = scalar_lea.hbm %s1, %s33
      %s35 = sshll.u32 [#allocation7], 4
      %s36 = int_to_ptr.vmem [resolvable:$true] %s35
      %41 = dma.hbm_to_vmem [thread:$0]  %s34, 256, %s36, [#allocation8], 128, 128, 8
    $region9: #{tpu_custom_call.1} parent=1 // pred_fallthru
      _
    // Predicated region
    $region10: #{tpu_custom_call.1} parent=1 // pred_check
      _
    $region11: #{tpu_custom_call.1} parent=1 // pred_check_branch
      %43 = sbr.rel (0) target = $region13
    $region12: #{tpu_custom_call.1} parent=1 // pred_region
      %44 = dma.done [#allocation5], 256
    $region13: #{tpu_custom_call.1} parent=1 // pred_fallthru
      _
    // Predicated region
    $region14: #{tpu_custom_call.1} parent=1 // pred_check
      _
    $region15: #{tpu_custom_call.1} parent=1 // pred_check_branch
      %46 = sbr.rel (0) target = $region17
    $region16: #{tpu_custom_call.1} parent=1 // pred_region
      %47 = dma.done [#allocation8], 256
    $region17: #{tpu_custom_call.1} parent=1 // pred_fallthru
      _
    %s48 = sadd.s32 0, 0
    %s49 = smul.u32 2, %s48
    %s50 = sadd.s32 0, 0
    %s51 = smul.u32 2, %s50
    %p52 = scmp.eq.s32.totalorder 0, 0
    // Predicated region
    $region18: #{tpu_custom_call.1} parent=1 // pred_check
      %p53 = pneg %p52
    $region19: #{tpu_custom_call.1} parent=1 // pred_check_branch
      %55 = sbr.rel (%p53) target = $region21
    $region20: #{tpu_custom_call.1} parent=1 // pred_region
      %56 = vst [vmem:[#allocation2] sm:$0xff] 0.0
      %vm57 = vcmask 7168
      %58 = vst.msk [vmem:[#allocation3] sm:$0xff] %vm57, 0.0
    $region21: #{tpu_custom_call.1} parent=1 // pred_fallthru
      _
    %v59 = vld [vmem:[#allocation4] sm:$0xff]
    %v60 = vld [vmem:[#allocation4 + $0x8] sm:$0xff]
    %v61 = vld [vmem:[#allocation7] sm:$0xff]
    %v62 = vld [vmem:[#allocation7 + $0x8] sm:$0xff]
    %63 = vmax.xlane.f32.xlu0 %v59
    %v64 = vpop.xlane.xlu0 %63
    %65 = vmax.xlane.f32.xlu0 %v60
    %v66 = vpop.xlane.xlu0 %65
    %v67 = vsub.f32 %v59, %v64
    %v68 = vsub.f32 %v60, %v66
    %v69 = vmul.f32 %v67, 1.442695
    %v70 = vpow.pop %v69
    %v71 = vmul.f32 %v68, 1.442695
    %v72 = vpow.pop %v71
    %73 = vadd.xlane.f32.xlu0 %v70
    %v74 = vpop.xlane.xlu0 %73
    %75 = vadd.xlane.f32.xlu0 %v72
    %v76 = vpop.xlane.xlu0 %75
    %v77 = vlog2.pop %v74
    %v78 = vmul.f32 %v77, 0.6931472
    %v79 = vlog2.pop %v76
    %v80 = vmul.f32 %v79, 0.6931472
    %81 = vadd.xlane.f32.xlu0 %v61
    %v82 = vpop.xlane.xlu0 %81
    %83 = vadd.xlane.f32.xlu0 %v62
    %v84 = vpop.xlane.xlu0 %83
    %vm85 = vcmp.eq.f32.partialorder %v82, 0.0
    %vm86 = vcmp.eq.f32.partialorder %v84, 0.0
    %v87 = vsel %vm85, 1e-06, %v82
    %v88 = vsel %vm86, 1e-06, %v84
    %v89 = vmul.f32 %v61, %v67
    %v90 = vmul.f32 %v62, %v68
    %91 = vadd.xlane.f32.xlu0 %v89
    %v92 = vpop.xlane.xlu0 %91
    %93 = vadd.xlane.f32.xlu0 %v90
    %v94 = vpop.xlane.xlu0 %93
    %vm95 = vcmp.eq.f32.partialorder %v61, 0.0
    %vm96 = vcmp.eq.f32.partialorder %v62, 0.0
    %v97 = vsel %vm95, 1.0, %v61
    %v98 = vsel %vm96, 1.0, %v62
    %v99 = vlog2.pop %v97
    %v100 = vmul.f32 %v99, 0.6931472
    %v101 = vlog2.pop %v98
    %v102 = vmul.f32 %v101, 0.6931472
    %v103 = vmul.f32 %v61, %v100
    %v104 = vmul.f32 %v62, %v102
    %105 = vadd.xlane.f32.xlu0 %v103
    %v106 = vpop.xlane.xlu0 %105
    %107 = vadd.xlane.f32.xlu0 %v104
    %v108 = vpop.xlane.xlu0 %107
    %v109 = vsub.f32 %v106, %v92
    %v110 = vsub.f32 %v108, %v94
    %v111 = vmul.f32 %v78, %v82
    %v112 = vmul.f32 %v80, %v84
    %v113 = vadd.f32 %v109, %v111
    %v114 = vadd.f32 %v110, %v112
    %v115 = vlog2.pop %v87
    %v116 = vmul.f32 %v115, 0.6931472
    %v117 = vlog2.pop %v88
    %v118 = vmul.f32 %v117, 0.6931472
    %v119 = vmul.f32 %v116, %v82
    %v120 = vmul.f32 %v118, %v84
    %v121 = vsub.f32 %v113, %v119
    %v122 = vsub.f32 %v114, %v120
    %v123 = vrcp.pop %v87
    %v124 = vmul.f32 %v121, %v123
    %v125 = vrcp.pop %v88
    %v126 = vmul.f32 %v122, %v125
    %v127 = vmax.f32 %v59, 0.0
    %v128 = vmax.f32 %v60, 0.0
    %v129 = vmul.f32 %v59, %v61
    %v130 = vmul.f32 %v60, %v62
    %v131 = vsub.f32 %v127, %v129
    %v132 = vsub.f32 %v128, %v130
    %v133 = vand.u32 2147483647, %v59
    %v134 = vand.u32 2147483647, %v60
    %v135 = vsub.f32 0.0, %v133
    %v136 = vsub.f32 0.0, %v134
    %v137 = vmul.f32 %v135, 1.442695
    %v138 = vpow.pop %v137
    %v139 = vmul.f32 %v136, 1.442695
    %v140 = vpow.pop %v139
    %v141 = vadd.f32 %v138, 1.0
    %v142 = vlog2.pop %v141
    %v143 = vmul.f32 %v142, 0.6931472
    %v144 = vmul.f32 -0.5, %v138
    %v145 = vadd.f32 %v144, 1.0
    %v146 = vmul.f32 %v145, %v138
    %v147 = vand.u32 2147483647, %v138
    %vm148 = vcmp.lt.f32.partialorder %v147, 0.0004427343
    %v149 = vsel %vm148, %v146, %v143
    %v150 = vadd.f32 %v140, 1.0
    %v151 = vlog2.pop %v150
    %v152 = vmul.f32 %v151, 0.6931472
    %v153 = vmul.f32 -0.5, %v140
    %v154 = vadd.f32 %v153, 1.0
    %v155 = vmul.f32 %v154, %v140
    %v156 = vand.u32 2147483647, %v140
    %vm157 = vcmp.lt.f32.partialorder %v156, 0.0004427343
    %v158 = vsel %vm157, %v155, %v152
    %v159 = vadd.f32 %v131, %v149
    %v160 = vadd.f32 %v132, %v158
    %v161 = vld [vmem:[#allocation2] sm:$0xff]
    %v162 = vadd.f32 %v159, %v160
    %v163 = vadd.f32 %v161, %v162
    %164 = vst [vmem:[#allocation2] sm:$0xff] %v163
    %v165 = vld [vmem:[#allocation3] sm:$0xff]
    %v166 = vadd.f32 %v124, %v126
    %v167 = vadd.f32 %v165, %v166
    %vm168 = vcmask 7168
    %169 = vst.msk [vmem:[#allocation3] sm:$0xff] %vm168, %v167
    // Predicated region
    $region22: #{tpu_custom_call.1} parent=1 // pred_check
      %p170 = pneg %p52
    $region23: #{tpu_custom_call.1} parent=1 // pred_check_branch
      %172 = sbr.rel (%p170) target = $region25
    $region24: #{tpu_custom_call.1} parent=1 // pred_region
      %v173 = vld [vmem:[#allocation3] sm:$0xff]
      %v174 = vsel %vm168, %v173, 0.0
      %175 = vadd.xlane.f32.xlu0 %v174
      %v176 = vpop.xlane.xlu0 %175
      %v177 = vrot.slane %v176, 4
      %v178 = vadd.f32 %v176, %v177
      %v179 = vrot.slane %v178, 2
      %v180 = vadd.f32 %v178, %v179
      %v181 = vrot.slane %v180, 1
      %v182 = vadd.f32 %v180, %v181
      %s183 = vtos %v182
      %s184 = smul.f32 %s183, 0.5
      %v185 = vld [vmem:[#allocation2] sm:$0xff]
      %186 = vadd.xlane.f32.xlu0 %v185
      %v187 = vpop.xlane.xlu0 %186
      %v188 = vrot.slane %v187, 4
      %v189 = vadd.f32 %v187, %v188
      %v190 = vrot.slane %v189, 2
      %v191 = vadd.f32 %v189, %v190
      %v192 = vrot.slane %v191, 1
      %v193 = vadd.f32 %v191, %v192
      %s194 = vtos %v193
      %s195 = sadd.f32 %s184, %s194
      %v196 = vstv %s195
      %197 = vst [vmem:[#allocation9] sm:$0xff] %v196
    $region25: #{tpu_custom_call.1} parent=1 // pred_fallthru
      _
    // Predicated region
    $region26: #{tpu_custom_call.1} parent=1 // pred_check
      _
    $region27: #{tpu_custom_call.1} parent=1 // pred_check_branch
      %199 = sbr.rel (0) target = $region29
    $region28: #{tpu_custom_call.1} parent=1 // pred_region
      %s201 = ssub.s32 128, 128
      %202 = vsyncadd [#allocation6], %s201
      %s204 = sshll.u32 [#allocation9], 4
      %s205 = int_to_ptr.vmem [resolvable:$true] %s204
      %207 = dma.vmem_to_hbm [thread:$0]  %s205, 128, %s2, [#allocation6]
    $region29: #{tpu_custom_call.1} parent=1 // pred_fallthru
      _
    // Predicated region
    $region30: #{tpu_custom_call.1} parent=1 // pred_check
      _
    $region31: #{tpu_custom_call.1} parent=1 // pred_check_branch
      %209 = sbr.rel (0) target = $region33
    $region32: #{tpu_custom_call.1} parent=1 // pred_region
      %210 = dma.done [#allocation6], 128
    $region33: #{tpu_custom_call.1} parent=1 // pred_fallthru
      _
    %211 = vsyncpa [#allocation5], 1
    %212 = vsyncpa [#allocation8], 1
    %213 = vsyncpa [#allocation6], 1

</llo_original>
